<compile_context>
chip_gen: v7x
topology: tpu7x:2x2x1
jax: 0.10.0
libtpu: 0.0.40
codegen_flags: <defaults>
</compile_context>

<pallas_src>
import math

import jax
import jax.numpy as jnp
from jax.experimental import pallas as pl
from jax.experimental.pallas import tpu as pltpu

# --- problem sizes (small, consistent with the module) ---
BATCH = 2
STEP_DIM = 8       # step_dim    (sequence length)
FEATURE_DIM = 32   # feature_dim (hidden size)


def attention_kernel(x_ref, wsel_ref, b_ref, sel_exp_ref, sel_red_ref, o_ref):
    """One batch tile per invocation, everything lane-dense on the flat layout.

    x_ref:       (Bt, S*F)  VMEM  flat input slab (row b = x[b].reshape(-1))
    wsel_ref:    (S*F, S)   VMEM  block-diagonal replication of the (F,1) weight
    b_ref:       (1, S)     VMEM  per-step bias
    sel_exp_ref: (S, S*F)   VMEM  constant 0/1 expansion matrix
    sel_red_ref: (S*F, F)   VMEM  constant 0/1 pooling (sum over S) matrix
    o_ref:       (Bt, F)    VMEM
    """
    x = x_ref[...]                                                     # (Bt, S*F) f32

    # eij[b, s] = sum_f x[b, s, f] * w[f]   -- MXU matmul on the flat layout.
    eij = jnp.dot(x, wsel_ref[...], preferred_element_type=jnp.float32)  # (Bt, S)
    eij = jnp.tanh(eij + b_ref[...])                                   # bias bcast (EUP tanh)
    a = jnp.exp(eij)                                                   # (Bt, S)   (EUP exp)

    denom = jnp.sum(a, axis=-1, keepdims=True)                         # (Bt, 1)
    a = a / denom + 1e-10                                              # matches torch exactly

    # Expand a back to the flat layout and pool over S, both on the MXU.
    a_exp = jnp.dot(a, sel_exp_ref[...], preferred_element_type=jnp.float32)       # (Bt, S*F)
    out = jnp.dot(x * a_exp, sel_red_ref[...], preferred_element_type=jnp.float32)  # (Bt, F)
    o_ref[...] = out.astype(o_ref.dtype)


def attention(x, weight, bias):
    """x: (B, S, F), weight: (F, 1) or (F,), bias: (S,)  ->  (B, F)."""
    B, S, F = x.shape
    SF = S * F

    # Lane-dense flat slab of x: (B, S*F).  Built by a cheap wrapper reshape here;
    # ideally produced in this layout upstream so no relayout copy is ever paid.
    x_flat = x.reshape(B, SF).astype(jnp.float32)

    w = weight.reshape(F, 1).astype(jnp.float32)
    eye_s = jnp.eye(S, dtype=jnp.float32)
    wsel = jnp.kron(eye_s, w)                                          # (S*F, S)
    sel_exp = jnp.kron(eye_s, jnp.ones((1, F), jnp.float32))           # (S, S*F)
    sel_red = jnp.kron(jnp.ones((S, 1), jnp.float32),
                       jnp.eye(F, dtype=jnp.float32))                  # (S*F, F)
    b2d = bias.reshape(1, S).astype(jnp.float32)

    # Batch tile: ~1 MiB of x per grid step (SF=256 f32 -> 1 KiB/row).  Safe for
    # v5e's 16 MiB scoped-VMEM default and v7x's 32 MiB / 64 MiB physical VMEM
    # with default double buffering; multi-step "parallel" grid lets v7x split cores.
    target_rows = 1024
    if B <= target_rows:
        bt, b_pad = B, B
    else:
        bt = target_rows
        b_pad = math.ceil(B / bt) * bt
        if b_pad != B:
            x_flat = jnp.pad(x_flat, ((0, b_pad - B), (0, 0)))
    grid = (b_pad // bt,)

    out = pl.pallas_call(
        attention_kernel,
        out_shape=jax.ShapeDtypeStruct((b_pad, F), jnp.float32),
        grid_spec=pltpu.PrefetchScalarGridSpec(
            num_scalar_prefetch=0,
            grid=grid,
            in_specs=[
                pl.BlockSpec((bt, SF), lambda i: (i, 0)),    # streamed batch tile
                pl.BlockSpec((SF, S), lambda i: (0, 0)),     # constant blocks: fetched once,
                pl.BlockSpec((1, S), lambda i: (0, 0)),      # revisited identically each step
                pl.BlockSpec((S, SF), lambda i: (0, 0)),
                pl.BlockSpec((SF, F), lambda i: (0, 0)),
            ],
            out_specs=pl.BlockSpec((bt, F), lambda i: (i, 0)),
        ),
        compiler_params=pltpu.CompilerParams(
            dimension_semantics=("parallel",),
        ),
    )(x_flat, wsel, b2d, sel_exp, sel_red)

    return out[:B] if b_pad != B else out


def attention_ref(x, weight, bias):
    """Pure-JAX reference replicating the PyTorch forward exactly (mask=None)."""
    B, S, F = x.shape
    eij = (x.reshape(-1, F) @ weight.reshape(F, 1)).reshape(B, S)
    eij = jnp.tanh(eij + bias[None, :])
    a = jnp.exp(eij)
    a = a / jnp.sum(a, axis=1, keepdims=True) + 1e-10
    return jnp.sum(x * a[:, :, None], axis=1)


if __name__ == "__main__":
    key = jax.random.PRNGKey(0)
    kx, kw, kb = jax.random.split(key, 3)

    x = jax.random.normal(kx, (BATCH, STEP_DIM, FEATURE_DIM), dtype=jnp.float32)

    # xavier_uniform_ init for weight of PyTorch shape (feature_dim, 1)
    bound = (6.0 / (FEATURE_DIM + 1)) ** 0.5
    weight = jax.random.uniform(kw, (FEATURE_DIM, 1), jnp.float32, -bound, bound)
    # bias parameter (module initializes to zeros; random here to exercise the add path)
    bias = 0.1 * jax.random.normal(kb, (STEP_DIM,), dtype=jnp.float32)

    out = jax.block_until_ready(attention(x, weight, bias))
    ref = jax.block_until_ready(attention_ref(x, weight, bias))

    assert out.shape == (BATCH, FEATURE_DIM)
    assert jnp.allclose(out, ref, atol=1e-5, rtol=1e-4), "mismatch vs reference"
    print("KERNEL_OK")
</pallas_src>

<mosaic_0001>
module attributes {stable_mosaic.version = 11 : i64} {
  func.func @attention_kernel(%arg0: i32, %arg1: memref<2x256xf32, #tpu.memory_space<vmem>>, %arg2: memref<256x8xf32, #tpu.memory_space<vmem>>, %arg3: memref<1x8xf32, #tpu.memory_space<vmem>>, %arg4: memref<8x256xf32, #tpu.memory_space<vmem>>, %arg5: memref<256x32xf32, #tpu.memory_space<vmem>>, %arg6: memref<2x32xf32, #tpu.memory_space<vmem>>) attributes {dimension_semantics = [#tpu.dimension_semantics<parallel>], iteration_bounds = array<i64: 1>, scalar_prefetch = 0 : i64, scratch_operands = 0 : i64, tpu.core_type = #tpu.core_type<tc>, window_params = [{transform_indices = @transform_0, window_bounds = array<i64: 2, 256>}, {pipeline_mode = #tpu.pipeline_mode<synchronous>, transform_indices = @transform_1, window_bounds = array<i64: 256, 8>}, {pipeline_mode = #tpu.pipeline_mode<synchronous>, transform_indices = @transform_2, window_bounds = array<i64: 1, 8>}, {pipeline_mode = #tpu.pipeline_mode<synchronous>, transform_indices = @transform_3, window_bounds = array<i64: 8, 256>}, {pipeline_mode = #tpu.pipeline_mode<synchronous>, transform_indices = @transform_4, window_bounds = array<i64: 256, 32>}, {transform_indices = @transform_5, window_bounds = array<i64: 2, 32>}]} {
    %c0 = arith.constant 0 : index
    %c0_0 = arith.constant 0 : index
    %0 = vector.load %arg1[%c0, %c0_0] : memref<2x256xf32, #tpu.memory_space<vmem>>, vector<2x256xf32>
    %c0_1 = arith.constant 0 : index
    %c0_2 = arith.constant 0 : index
    %1 = vector.load %arg2[%c0_1, %c0_2] : memref<256x8xf32, #tpu.memory_space<vmem>>, vector<256x8xf32>
    %cst = arith.constant dense<0.000000e+00> : vector<2x8xf32>
    %2 = tpu.matmul %0, %1, %cst {dimension_numbers = #tpu.dot_dimension_numbers<[1], [0], [0], [1], [0, 0, 1, 1], [], []>} : vector<2x256xf32>, vector<256x8xf32>, vector<2x8xf32> -> vector<2x8xf32>
    %c0_3 = arith.constant 0 : index
    %c0_4 = arith.constant 0 : index
    %3 = vector.load %arg3[%c0_3, %c0_4] : memref<1x8xf32, #tpu.memory_space<vmem>>, vector<1x8xf32>
    %4 = vector.broadcast %3 : vector<1x8xf32> to vector<2x8xf32>
    %5 = arith.addf %2, %4 : vector<2x8xf32>
    %6 = math.tanh %5 : vector<2x8xf32>
    %7 = math.exp %6 : vector<2x8xf32>
    %cst_5 = arith.constant dense<0.000000e+00> : vector<2xf32>
    %8 = vector.multi_reduction <add>, %7, %cst_5 [1] : vector<2x8xf32> to vector<2xf32>
    %9 = vector.shape_cast %8 : vector<2xf32> to vector<2x1xf32>
    %10 = vector.broadcast %9 : vector<2x1xf32> to vector<2x8xf32>
    %11 = arith.divf %7, %10 : vector<2x8xf32>
    %cst_6 = arith.constant 1.000000e-10 : f32
    %12 = vector.broadcast %cst_6 : f32 to vector<2x8xf32>
    %13 = arith.addf %11, %12 : vector<2x8xf32>
    %c0_7 = arith.constant 0 : index
    %c0_8 = arith.constant 0 : index
    %14 = vector.load %arg4[%c0_7, %c0_8] : memref<8x256xf32, #tpu.memory_space<vmem>>, vector<8x256xf32>
    %cst_9 = arith.constant dense<0.000000e+00> : vector<2x256xf32>
    %15 = tpu.matmul %13, %14, %cst_9 {dimension_numbers = #tpu.dot_dimension_numbers<[1], [0], [0], [1], [0, 0, 1, 1], [], []>} : vector<2x8xf32>, vector<8x256xf32>, vector<2x256xf32> -> vector<2x256xf32>
    %16 = arith.mulf %0, %15 : vector<2x256xf32>
    %c0_10 = arith.constant 0 : index
    %c0_11 = arith.constant 0 : index
    %17 = vector.load %arg5[%c0_10, %c0_11] : memref<256x32xf32, #tpu.memory_space<vmem>>, vector<256x32xf32>
    %cst_12 = arith.constant dense<0.000000e+00> : vector<2x32xf32>
    %18 = tpu.matmul %16, %17, %cst_12 {dimension_numbers = #tpu.dot_dimension_numbers<[1], [0], [0], [1], [0, 0, 1, 1], [], []>} : vector<2x256xf32>, vector<256x32xf32>, vector<2x32xf32> -> vector<2x32xf32>
    %c0_13 = arith.constant 0 : index
    %c0_14 = arith.constant 0 : index
    %19 = vector.load %arg6[%c0_13, %c0_14] : memref<2x32xf32, #tpu.memory_space<vmem>>, vector<2x32xf32>
    tpu.vector_store %arg6[%c0_13, %c0_14], %18 {strides = array<i32>} : memref<2x32xf32, #tpu.memory_space<vmem>>, vector<2x32xf32>,
    return
  }
  func.func @transform_0(%arg0: i32) -> (i32, i32) {
    %c0_i32 = arith.constant 0 : i32
    %c0_i32_0 = arith.constant 0 : i32
    return %arg0, %c0_i32 : i32, i32
  }
  func.func @transform_1(%arg0: i32) -> (i32, i32) {
    %c0_i32 = arith.constant 0 : i32
    %c0_i32_0 = arith.constant 0 : i32
    %c0_i32_1 = arith.constant 0 : i32
    return %c0_i32, %c0_i32_0 : i32, i32
  }
  func.func @transform_2(%arg0: i32) -> (i32, i32) {
    %c0_i32 = arith.constant 0 : i32
    %c0_i32_0 = arith.constant 0 : i32
    %c0_i32_1 = arith.constant 0 : i32
    return %c0_i32, %c0_i32_0 : i32, i32
  }
  func.func @transform_3(%arg0: i32) -> (i32, i32) {
    %c0_i32 = arith.constant 0 : i32
    %c0_i32_0 = arith.constant 0 : i32
    %c0_i32_1 = arith.constant 0 : i32
    return %c0_i32, %c0_i32_0 : i32, i32
  }
  func.func @transform_4(%arg0: i32) -> (i32, i32) {
    %c0_i32 = arith.constant 0 : i32
    %c0_i32_0 = arith.constant 0 : i32
    %c0_i32_1 = arith.constant 0 : i32
    return %c0_i32, %c0_i32_0 : i32, i32
  }
  func.func @transform_5(%arg0: i32) -> (i32, i32) {
    %c0_i32 = arith.constant 0 : i32
    %c0_i32_0 = arith.constant 0 : i32
    return %arg0, %c0_i32 : i32, i32
  }
}

</mosaic_0001>

<llo_original>
// kernel: tpu_custom_call.1
$region0: #{tpu_custom_call.1}
  #allocation0 [shape = 'u32[]', space=smem, size = 0x4, offset = 0x4, fixed_abs, tag = 'smem constant byte address 0x4 - core index']
  #allocation1 [shape = 'u32[144,128]{1,0:T(1,128)}', space=vmem, size = 0x12000, scoped, tag = 'internal scratch']
  %s0 = inlined_call_operand.vmem [shape: f32[2,256], index: 0, kind: input, shape index: {}]
  %s1 = inlined_call_operand.vmem [shape: f32[256,8], index: 1, kind: input, shape index: {}]
  %s2 = inlined_call_operand.vmem [shape: f32[1,8], index: 2, kind: input, shape index: {}]
  %s3 = inlined_call_operand.vmem [shape: f32[8,256], index: 3, kind: input, shape index: {}]
  %s4 = inlined_call_operand.vmem [shape: f32[256,32], index: 4, kind: input, shape index: {}]
  %s5 = inlined_call_operand.hbm [shape: f32[2,32], index: 5, kind: output, shape index: {}]
  %s6 = sld [smem:[#allocation0]]
  $region30: #{tpu_custom_call.1} parent=0
    _
  %s8 = ssub.s32 1, %s6
  %s9 = scalar_select 0, %s8, %s6
  $region1: #{tpu_custom_call.1} parent=0
    #allocation2 [shape = 'u8[1024]{0}', space=vmem, size = 0x400, scoped, tag = 'output window, operand 0, single buffered']
    #allocation3 [shape = 's32[1]{0}', space=sflag, size = 0x4, scoped, tag = 'scoped memory for tpu_custom_call.1']
    %10 = vsyncpa [#allocation3], 0
    // Predicated region
    $region2: #{tpu_custom_call.1} parent=1 // pred_check
      _
    $region3: #{tpu_custom_call.1} parent=1 // pred_check_branch
      %12 = sbr.rel (0) target = $region5
    $region4: #{tpu_custom_call.1} parent=1 // pred_region
      _
    $region5: #{tpu_custom_call.1} parent=1 // pred_fallthru
      _
    // Predicated region
    $region6: #{tpu_custom_call.1} parent=1 // pred_check
      _
    $region7: #{tpu_custom_call.1} parent=1 // pred_check_branch
      %14 = sbr.rel (0) target = $region9
    $region8: #{tpu_custom_call.1} parent=1 // pred_region
      _
    $region9: #{tpu_custom_call.1} parent=1 // pred_fallthru
      _
    // Predicated region
    $region10: #{tpu_custom_call.1} parent=1 // pred_check
      _
    $region11: #{tpu_custom_call.1} parent=1 // pred_check_branch
      %16 = sbr.rel (0) target = $region13
    $region12: #{tpu_custom_call.1} parent=1 // pred_region
      _
    $region13: #{tpu_custom_call.1} parent=1 // pred_fallthru
      _
    // Predicated region
    $region14: #{tpu_custom_call.1} parent=1 // pred_check
      _
    $region15: #{tpu_custom_call.1} parent=1 // pred_check_branch
      %18 = sbr.rel (0) target = $region17
    $region16: #{tpu_custom_call.1} parent=1 // pred_region
      _
    $region17: #{tpu_custom_call.1} parent=1 // pred_fallthru
      _
    // Predicated region
    $region18: #{tpu_custom_call.1} parent=1 // pred_check
      _
    $region19: #{tpu_custom_call.1} parent=1 // pred_check_branch
      %20 = sbr.rel (0) target = $region21
    $region20: #{tpu_custom_call.1} parent=1 // pred_region
      _
    $region21: #{tpu_custom_call.1} parent=1 // pred_fallthru
      _
    %v21 = vld [vmem:[%s0] sm:$0xf]
    %v22 = vld [vmem:[%s1] sm:$0xff]
    %v23 = vld [vmem:[%s1 + $0x8] sm:$0xff]
    %v24 = vld [vmem:[%s1 + $0x10] sm:$0xff]
    %v25 = vld [vmem:[%s1 + $0x18] sm:$0xff]
    %v26 = vld [vmem:[%s1 + $0x20] sm:$0xff]
    %v27 = vld [vmem:[%s1 + $0x28] sm:$0xff]
    %v28 = vld [vmem:[%s1 + $0x30] sm:$0xff]
    %v29 = vld [vmem:[%s1 + $0x38] sm:$0xff]
    %v30 = vld [vmem:[%s1 + $0x40] sm:$0xff]
    %v31 = vld [vmem:[%s1 + $0x48] sm:$0xff]
    %v32 = vld [vmem:[%s1 + $0x50] sm:$0xff]
    %v33 = vld [vmem:[%s1 + $0x58] sm:$0xff]
    %v34 = vld [vmem:[%s1 + $0x60] sm:$0xff]
    %v35 = vld [vmem:[%s1 + $0x68] sm:$0xff]
    %v36 = vld [vmem:[%s1 + $0x70] sm:$0xff]
    %v37 = vld [vmem:[%s1 + $0x78] sm:$0xff]
    %v38 = vld [vmem:[%s1 + $0x80] sm:$0xff]
    %v39 = vld [vmem:[%s1 + $0x88] sm:$0xff]
    %v40 = vld [vmem:[%s1 + $0x90] sm:$0xff]
    %v41 = vld [vmem:[%s1 + $0x98] sm:$0xff]
    %v42 = vld [vmem:[%s1 + $0xa0] sm:$0xff]
    %v43 = vld [vmem:[%s1 + $0xa8] sm:$0xff]
    %v44 = vld [vmem:[%s1 + $0xb0] sm:$0xff]
    %v45 = vld [vmem:[%s1 + $0xb8] sm:$0xff]
    %v46 = vld [vmem:[%s1 + $0xc0] sm:$0xff]
    %v47 = vld [vmem:[%s1 + $0xc8] sm:$0xff]
    %v48 = vld [vmem:[%s1 + $0xd0] sm:$0xff]
    %v49 = vld [vmem:[%s1 + $0xd8] sm:$0xff]
    %v50 = vld [vmem:[%s1 + $0xe0] sm:$0xff]
    %v51 = vld [vmem:[%s1 + $0xe8] sm:$0xff]
    %v52 = vld [vmem:[%s1 + $0xf0] sm:$0xff]
    %v53 = vld [vmem:[%s1 + $0xf8] sm:$0xff]
    %v54 = vld [vmem:[%s2] sm:$0x1]
    %v56 = vlaneseq
    %v57 = vshrl.u32 %v56, 7
    %v58 = vsub.s32 0, %v57
    %v59 = vrot.slane %v54, %v58
    %v63 = vunpack.c.l.s4 1983009808
    %v64 = vunpack.c.0.s8 %v63
    %v65 = vlaneseq
    %v66 = vshrl.u32 %v65, 7
    %v67 = vsub.s32 %v64, %v66
    %v68 = vrot.slane %v21, %v67
    %v69 = vcombine.high %v68, %v68
    %72 = vmatprep.subr.mxu0 0.0
    %73 = vmatpush1.msra.mxu0 %v22
    %74 = vmatprep.subr.mxu0 0.0
    %75 = vmatpush1.msra.mxu0 %v23
    %76 = vmatprep.subr.mxu0 0.0
    %77 = vmatpush1.msra.mxu0 %v24
    %78 = vmatprep.subr.mxu0 0.0
    %79 = vmatpush1.msra.mxu0 %v25
    %80 = vmatprep.subr.mxu0 0.0
    %81 = vmatpush1.msra.mxu0 %v26
    %82 = vmatprep.subr.mxu0 0.0
    %83 = vmatpush1.msra.mxu0 %v27
    %84 = vmatprep.subr.mxu0 0.0
    %85 = vmatpush1.msra.mxu0 %v28
    %86 = vmatprep.subr.mxu0 0.0
    %87 = vmatpush1.msra.mxu0 %v29
    %88 = vmatprep.subr.mxu0 0.0
    %89 = vmatpush1.msra.mxu0 %v30
    %90 = vmatprep.subr.mxu0 0.0
    %91 = vmatpush1.msra.mxu0 %v31
    %92 = vmatprep.subr.mxu0 0.0
    %93 = vmatpush1.msra.mxu0 %v32
    %94 = vmatprep.subr.mxu0 0.0
    %95 = vmatpush1.msra.mxu0 %v33
    %96 = vmatprep.subr.mxu0 0.0
    %97 = vmatpush1.msra.mxu0 %v34
    %98 = vmatprep.subr.mxu0 0.0
    %99 = vmatpush1.msra.mxu0 %v35
    %100 = vmatprep.subr.mxu0 0.0
    %101 = vmatpush1.msra.mxu0 %v36
    %102 = vmatprep.subr.mxu0 0.0
    %103 = vmatpush1.msra.mxu0 %v37
    %104 = vmatprep.subr.mxu0 0.0
    %105 = vmatpush1.msra.mxu0 %v38
    %106 = vmatprep.subr.mxu0 0.0
    %107 = vmatpush1.msra.mxu0 %v39
    %108 = vmatprep.subr.mxu0 0.0
    %109 = vmatpush1.msra.mxu0 %v40
    %110 = vmatprep.subr.mxu0 0.0
    %111 = vmatpush1.msra.mxu0 %v41
    %112 = vmatprep.subr.mxu0 0.0
    %113 = vmatpush1.msra.mxu0 %v42
    %114 = vmatprep.subr.mxu0 0.0
    %115 = vmatpush1.msra.mxu0 %v43
    %116 = vmatprep.subr.mxu0 0.0
    %117 = vmatpush1.msra.mxu0 %v44
    %118 = vmatprep.subr.mxu0 0.0
    %119 = vmatpush1.msra.mxu0 %v45
    %120 = vmatprep.subr.mxu0 0.0
    %121 = vmatpush1.msra.mxu0 %v46
    %122 = vmatprep.subr.mxu0 0.0
    %123 = vmatpush1.msra.mxu0 %v47
    %124 = vmatprep.subr.mxu0 0.0
    %125 = vmatpush1.msra.mxu0 %v48
    %126 = vmatprep.subr.mxu0 0.0
    %127 = vmatpush1.msra.mxu0 %v49
    %128 = vmatprep.subr.mxu0 0.0
    %129 = vmatpush1.msra.mxu0 %v50
    %130 = vmatprep.subr.mxu0 0.0
    %131 = vmatpush1.msra.mxu0 %v51
    %132 = vmatprep.subr.mxu0 0.0
    %133 = vmatpush1.msra.mxu0 %v52
    %134 = vmatprep.subr.mxu0 0.0
    %135 = vmatpush1.msra.mxu0 %v53
    %136 = vmatprep.mubr.f32.mxu0 %v69
    %137 = vmatmul.mubr.f32.gmra.mrb[0].mxu0 %v68
    %v138 = vpop.f32.mrb[0].mxu0
    %v139 = vadd.f32 %v59, %v138
    %v140 = vpop.f32.mrb[0].mxu0
    %141 = vdwg.mxu0
    %v142 = vtanh.pop %v139
    %v143 = vmul.f32 %v142, 1.442695
    %v144 = vpow.pop %v143
    %vm145 = vcmask 58368
    %v146 = vsel %vm145, %v144, 0.0
    %147 = vadd.xlane.f32.xlu0 %v146
    %v148 = vpop.xlane.xlu0 %147
    %v149 = vrcp.pop %v148
    %v150 = vmul.f32 %v144, %v149
    %v151 = vadd.f32 %v150, 1e-10
    %v152 = vld [vmem:[%s3] sm:$0xff]
    %v153 = vld [vmem:[%s3 + $0x8] sm:$0xff]
    %vm154 = vcmask 64512
    %v156 = vsel %vm154, %v151, 0
    %158 = vmatprep.subr.mxu0 %v153
    %159 = vmatpush1.msra.mxu0 %v152
    %160 = vmatprep.subr.mxu0 0.0
    %161 = vmatpush1.msra.mxu0 0.0
    %162 = vmatprep.subr.mxu0 0.0
    %163 = vmatpush1.msra.mxu0 0.0
    %164 = vmatprep.subr.mxu0 0.0
    %165 = vmatpush1.msra.mxu0 0.0
    %166 = vmatprep.subr.mxu0 0.0
    %167 = vmatpush1.msra.mxu0 0.0
    %168 = vmatprep.subr.mxu0 0.0
    %169 = vmatpush1.msra.mxu0 0.0
    %170 = vmatprep.subr.mxu0 0.0
    %171 = vmatpush1.msra.mxu0 0.0
    %172 = vmatprep.subr.mxu0 0.0
    %173 = vmatpush1.msra.mxu0 0.0
    %174 = vmatprep.subr.mxu0 0.0
    %175 = vmatpush1.msra.mxu0 0.0
    %176 = vmatprep.subr.mxu0 0.0
    %177 = vmatpush1.msra.mxu0 0.0
    %178 = vmatprep.subr.mxu0 0.0
    %179 = vmatpush1.msra.mxu0 0.0
    %180 = vmatprep.subr.mxu0 0.0
    %181 = vmatpush1.msra.mxu0 0.0
    %182 = vmatprep.subr.mxu0 0.0
    %183 = vmatpush1.msra.mxu0 0.0
    %184 = vmatprep.subr.mxu0 0.0
    %185 = vmatpush1.msra.mxu0 0.0
    %186 = vmatprep.subr.mxu0 0.0
    %187 = vmatpush1.msra.mxu0 0.0
    %188 = vmatprep.subr.mxu0 0.0
    %189 = vmatpush1.msra.mxu0 0.0
    %190 = vmatprep.subr.mxu0 0.0
    %191 = vmatpush1.msra.mxu0 0.0
    %192 = vmatprep.subr.mxu0 0.0
    %193 = vmatpush1.msra.mxu0 0.0
    %194 = vmatprep.subr.mxu0 0.0
    %195 = vmatpush1.msra.mxu0 0.0
    %196 = vmatprep.subr.mxu0 0.0
    %197 = vmatpush1.msra.mxu0 0.0
    %198 = vmatprep.subr.mxu0 0.0
    %199 = vmatpush1.msra.mxu0 0.0
    %200 = vmatprep.subr.mxu0 0.0
    %201 = vmatpush1.msra.mxu0 0.0
    %202 = vmatprep.subr.mxu0 0.0
    %203 = vmatpush1.msra.mxu0 0.0
    %204 = vmatprep.subr.mxu0 0.0
    %205 = vmatpush1.msra.mxu0 0.0
    %206 = vmatprep.subr.mxu0 0.0
    %207 = vmatpush1.msra.mxu0 0.0
    %208 = vmatprep.subr.mxu0 0.0
    %209 = vmatpush1.msra.mxu0 0.0
    %210 = vmatprep.subr.mxu0 0.0
    %211 = vmatpush1.msra.mxu0 0.0
    %212 = vmatprep.subr.mxu0 0.0
    %213 = vmatpush1.msra.mxu0 0.0
    %214 = vmatprep.subr.mxu0 0.0
    %215 = vmatpush1.msra.mxu0 0.0
    %216 = vmatprep.subr.mxu0 0.0
    %217 = vmatpush1.msra.mxu0 0.0
    %218 = vmatprep.subr.mxu0 0.0
    %219 = vmatpush1.msra.mxu0 0.0
    %220 = vmatprep.subr.mxu0 0.0
    %221 = vmatpush1.msra.mxu0 0.0
    %222 = vmatprep.mubr.f32.mxu0 0.0
    %223 = vmatmul.mubr.f32.gmra.mrb[0].mxu0 %v156
    %v224 = vpop.f32.mrb[0].mxu0
    %v225 = vadd.f32 0.0, %v224
    %v226 = vpop.f32.mrb[0].mxu0
    %v227 = vadd.f32 0.0, %v226
    %228 = vdwg.mxu0
    %v231 = vcombine.low %v225, %v227
    %v233 = vunpack.c.l.s4 1983009808
    %v234 = vunpack.c.0.s8 %v233
    %v235 = vlaneseq
    %v236 = vshrl.u32 %v235, 7
    %v237 = vsub.s32 %v234, %v236
    %v238 = vrot.slane %v231, %v237
    %v240 = vmul.f32 %v21, %v238
    %v241 = vld [vmem:[%s4] sm:$0xff]
    %v242 = vld [vmem:[%s4 + $0x8] sm:$0xff]
    %v243 = vld [vmem:[%s4 + $0x10] sm:$0xff]
    %v244 = vld [vmem:[%s4 + $0x18] sm:$0xff]
    %v245 = vld [vmem:[%s4 + $0x20] sm:$0xff]
    %v246 = vld [vmem:[%s4 + $0x28] sm:$0xff]
    %v247 = vld [vmem:[%s4 + $0x30] sm:$0xff]
    %v248 = vld [vmem:[%s4 + $0x38] sm:$0xff]
    %v249 = vld [vmem:[%s4 + $0x40] sm:$0xff]
    %v250 = vld [vmem:[%s4 + $0x48] sm:$0xff]
    %v251 = vld [vmem:[%s4 + $0x50] sm:$0xff]
    %v252 = vld [vmem:[%s4 + $0x58] sm:$0xff]
    %v253 = vld [vmem:[%s4 + $0x60] sm:$0xff]
    %v254 = vld [vmem:[%s4 + $0x68] sm:$0xff]
    %v255 = vld [vmem:[%s4 + $0x70] sm:$0xff]
    %v256 = vld [vmem:[%s4 + $0x78] sm:$0xff]
    %v257 = vld [vmem:[%s4 + $0x80] sm:$0xff]
    %v258 = vld [vmem:[%s4 + $0x88] sm:$0xff]
    %v259 = vld [vmem:[%s4 + $0x90] sm:$0xff]
    %v260 = vld [vmem:[%s4 + $0x98] sm:$0xff]
    %v261 = vld [vmem:[%s4 + $0xa0] sm:$0xff]
    %v262 = vld [vmem:[%s4 + $0xa8] sm:$0xff]
    %v263 = vld [vmem:[%s4 + $0xb0] sm:$0xff]
    %v264 = vld [vmem:[%s4 + $0xb8] sm:$0xff]
    %v265 = vld [vmem:[%s4 + $0xc0] sm:$0xff]
    %v266 = vld [vmem:[%s4 + $0xc8] sm:$0xff]
    %v267 = vld [vmem:[%s4 + $0xd0] sm:$0xff]
    %v268 = vld [vmem:[%s4 + $0xd8] sm:$0xff]
    %v269 = vld [vmem:[%s4 + $0xe0] sm:$0xff]
    %v270 = vld [vmem:[%s4 + $0xe8] sm:$0xff]
    %v271 = vld [vmem:[%s4 + $0xf0] sm:$0xff]
    %v272 = vld [vmem:[%s4 + $0xf8] sm:$0xff]
    %v275 = vunpack.c.l.s4 1983009808
    %v276 = vunpack.c.0.s8 %v275
    %v277 = vlaneseq
    %v278 = vshrl.u32 %v277, 7
    %v279 = vsub.s32 %v276, %v278
    %v280 = vrot.slane %v240, %v279
    %v281 = vcombine.high %v280, %v280
    %284 = vmatprep.subr.mxu0 0.0
    %285 = vmatpush1.msra.mxu0 %v241
    %286 = vmatprep.subr.mxu0 0.0
    %287 = vmatpush1.msra.mxu0 %v242
    %288 = vmatprep.subr.mxu0 0.0
    %289 = vmatpush1.msra.mxu0 %v243
    %290 = vmatprep.subr.mxu0 0.0
    %291 = vmatpush1.msra.mxu0 %v244
    %292 = vmatprep.subr.mxu0 0.0
    %293 = vmatpush1.msra.mxu0 %v245
    %294 = vmatprep.subr.mxu0 0.0
    %295 = vmatpush1.msra.mxu0 %v246
    %296 = vmatprep.subr.mxu0 0.0
    %297 = vmatpush1.msra.mxu0 %v247
    %298 = vmatprep.subr.mxu0 0.0
    %299 = vmatpush1.msra.mxu0 %v248
    %300 = vmatprep.subr.mxu0 0.0
    %301 = vmatpush1.msra.mxu0 %v249
    %302 = vmatprep.subr.mxu0 0.0
    %303 = vmatpush1.msra.mxu0 %v250
    %304 = vmatprep.subr.mxu0 0.0
    %305 = vmatpush1.msra.mxu0 %v251
    %306 = vmatprep.subr.mxu0 0.0
    %307 = vmatpush1.msra.mxu0 %v252
    %308 = vmatprep.subr.mxu0 0.0
    %309 = vmatpush1.msra.mxu0 %v253
    %310 = vmatprep.subr.mxu0 0.0
    %311 = vmatpush1.msra.mxu0 %v254
    %312 = vmatprep.subr.mxu0 0.0
    %313 = vmatpush1.msra.mxu0 %v255
    %314 = vmatprep.subr.mxu0 0.0
    %315 = vmatpush1.msra.mxu0 %v256
    %316 = vmatprep.subr.mxu0 0.0
    %317 = vmatpush1.msra.mxu0 %v257
    %318 = vmatprep.subr.mxu0 0.0
    %319 = vmatpush1.msra.mxu0 %v258
    %320 = vmatprep.subr.mxu0 0.0
    %321 = vmatpush1.msra.mxu0 %v259
    %322 = vmatprep.subr.mxu0 0.0
    %323 = vmatpush1.msra.mxu0 %v260
    %324 = vmatprep.subr.mxu0 0.0
    %325 = vmatpush1.msra.mxu0 %v261
    %326 = vmatprep.subr.mxu0 0.0
    %327 = vmatpush1.msra.mxu0 %v262
    %328 = vmatprep.subr.mxu0 0.0
    %329 = vmatpush1.msra.mxu0 %v263
    %330 = vmatprep.subr.mxu0 0.0
    %331 = vmatpush1.msra.mxu0 %v264
    %332 = vmatprep.subr.mxu0 0.0
    %333 = vmatpush1.msra.mxu0 %v265
    %334 = vmatprep.subr.mxu0 0.0
    %335 = vmatpush1.msra.mxu0 %v266
    %336 = vmatprep.subr.mxu0 0.0
    %337 = vmatpush1.msra.mxu0 %v267
    %338 = vmatprep.subr.mxu0 0.0
    %339 = vmatpush1.msra.mxu0 %v268
    %340 = vmatprep.subr.mxu0 0.0
    %341 = vmatpush1.msra.mxu0 %v269
    %342 = vmatprep.subr.mxu0 0.0
    %343 = vmatpush1.msra.mxu0 %v270
    %344 = vmatprep.subr.mxu0 0.0
    %345 = vmatpush1.msra.mxu0 %v271
    %346 = vmatprep.subr.mxu0 0.0
    %347 = vmatpush1.msra.mxu0 %v272
    %348 = vmatprep.mubr.f32.mxu0 %v281
    %349 = vmatmul.mubr.f32.gmra.mrb[0].mxu0 %v280
    %v350 = vpop.f32.mrb[0].mxu0
    %v351 = vadd.f32 0.0, %v350
    %v352 = vpop.f32.mrb[0].mxu0
    %353 = vdwg.mxu0
    %vm354 = vcmask 254976
    %355 = vst.msk [vmem:[#allocation2] sm:$0x3] %vm354, %v351
    // Predicated region
    $region22: #{tpu_custom_call.1} parent=1 // pred_check
      _
    $region23: #{tpu_custom_call.1} parent=1 // pred_check_branch
      %357 = sbr.rel (0) target = $region25
    $region24: #{tpu_custom_call.1} parent=1 // pred_region
      %s359 = ssub.s32 32, 32
      %360 = vsyncadd [#allocation3], %s359
      %s362 = sshll.u32 [#allocation2], 4
      %s363 = int_to_ptr.vmem [resolvable:$true] %s362
      %365 = dma.vmem_to_hbm [thread:$0]  %s363, 32, %s5, [#allocation3]
    $region25: #{tpu_custom_call.1} parent=1 // pred_fallthru
      _
    // Predicated region
    $region26: #{tpu_custom_call.1} parent=1 // pred_check
      _
    $region27: #{tpu_custom_call.1} parent=1 // pred_check_branch
      %367 = sbr.rel (0) target = $region29
    $region28: #{tpu_custom_call.1} parent=1 // pred_region
      %368 = dma.done [#allocation3], 32
    $region29: #{tpu_custom_call.1} parent=1 // pred_fallthru
      _
    %369 = vsyncpa [#allocation3], 1

</llo_original>
